<compile_context>
chip_gen: v6e
topology: v6e:2x2x1
jax: 0.10.0
libtpu: 0.0.40
codegen_flags: <defaults>
</compile_context>

<pallas_src>
import functools

import jax
import jax.numpy as jnp
from jax.experimental import pallas as pl
from jax.experimental.pallas import tpu as pltpu

_LANE = 128


def _maxpool4d_kernel(x_ref, o_ref, *, ker_shape, out_dims):
    # x_ref: (D1, D2, D3, D4, LANE) VMEM block; o_ref: (O0, O1, O2, O3, LANE).
    k0, k1, k2, k3 = ker_shape
    O0, O1, O2, O3 = out_dims

    # Stage 0: reduce window dim i0 along D1 (major axis), slicing the Ref
    # directly: each slice is a plain contiguous sub-slab load.
    t = x_ref[0:O0, :, :, :, :]
    for i0 in range(1, k0):
        t = jnp.maximum(t, x_ref[2 * i0:2 * i0 + O0, :, :, :, :])

    # Stage 1: reduce i1 along D2.
    r = t[:, 0:O1, :, :, :]
    for i1 in range(1, k1):
        r = jnp.maximum(r, t[:, 2 * i1:2 * i1 + O1, :, :, :])
    t = r

    # Stage 2: reduce i2 along D3.
    r = t[:, :, 0:O2, :, :]
    for i2 in range(1, k2):
        r = jnp.maximum(r, t[:, :, 2 * i2:2 * i2 + O2, :, :])
    t = r

    # Stage 3: reduce i3 along D4 (sublane axis).
    r = t[:, :, :, 0:O3, :]
    for i3 in range(1, k3):
        r = jnp.maximum(r, t[:, :, :, 2 * i3:2 * i3 + O3, :])

    o_ref[...] = r


def maxpool4d(x, ker_shape, stride):
    """Pallas implementation of MaxPool4d.forward.

    x: (N, C, D1, D2, D3, D4)
    returns: (N, C, O1, O2, O3, O4) with O_i = (D_i - k_i)//stride + 1
    """
    N, C, D1, D2, D3, D4 = x.shape
    ker_shape = tuple(int(k) for k in ker_shape)
    spatial = (D1, D2, D3, D4)
    out_dims = tuple((spatial[i] - ker_shape[i]) // stride + 1 for i in range(4))
    O0, O1, O2, O3 = out_dims

    # Explicit bound check: the dilated window must stay inside the input
    # (same condition under which the torch.as_strided view stays in storage).
    for i in range(4):
        if 2 * (ker_shape[i] - 1) + out_dims[i] > spatial[i]:
            raise ValueError(
                f"dilated window out of bounds on spatial dim {i}: "
                f"2*(k-1)+O = {2 * (ker_shape[i] - 1) + out_dims[i]} "
                f"> D = {spatial[i]}")

    NC = N * C
    nc_tiles = pl.cdiv(NC, _LANE)
    NC_pad = nc_tiles * _LANE

    # Re-layout: (N, C, D1..D4) -> (D1..D4, NC_pad). Flattened N*C sits on the
    # 128-wide lane axis; pooling shifts only touch non-lane dims and the
    # output's last dim is lane-dense (unmasked vst).
    xt = jnp.moveaxis(x.reshape(NC, D1, D2, D3, D4), 0, -1)
    if NC_pad != NC:
        xt = jnp.pad(xt, [(0, 0)] * 4 + [(0, NC_pad - NC)])

    itemsize = jnp.dtype(x.dtype).itemsize
    in_block = D1 * D2 * D3 * D4 * _LANE * itemsize
    out_block = O0 * O1 * O2 * O3 * _LANE * itemsize
    # double-buffered in/out blocks + separable-reduction live intermediates.
    vmem_needed = 2 * (in_block + out_block) + 2 * in_block
    # Budget for v7x's 64 MiB physical VMEM (v5e/v6e have 128 MiB).
    # TODO(synk): for very large spatial volumes, chunk D1 (output chunk plus a
    # 2*(k0-1) halo via an element-offset index_map) instead of failing here.
    if vmem_needed > 48 * 1024 * 1024:
        raise ValueError("spatial volume too large for a single VMEM block; "
                         "D1-halo chunking not implemented")
    vmem_limit = int(min(max(vmem_needed + (4 << 20), 32 << 20), 60 << 20))

    kernel = functools.partial(_maxpool4d_kernel,
                               ker_shape=ker_shape, out_dims=out_dims)

    out_t = pl.pallas_call(
        kernel,
        out_shape=jax.ShapeDtypeStruct((O0, O1, O2, O3, NC_pad), x.dtype),
        grid=(nc_tiles,),
        in_specs=[pl.BlockSpec((D1, D2, D3, D4, _LANE),
                               lambda t: (0, 0, 0, 0, t))],
        out_specs=pl.BlockSpec((O0, O1, O2, O3, _LANE),
                               lambda t: (0, 0, 0, 0, t)),
        compiler_params=pltpu.CompilerParams(
            dimension_semantics=("parallel",),
            vmem_limit_bytes=vmem_limit),
    )(xt)

    # Back to (N, C, O0, O1, O2, O3).
    out = jnp.moveaxis(out_t[..., :NC], -1, 0).reshape(N, C, O0, O1, O2, O3)
    return out


def _reference_maxpool4d(x, ker_shape, stride):
    """Pure-JAX reference matching the PyTorch as_strided + amax exactly."""
    spatial = x.shape[2:]
    O = tuple((spatial[i] - ker_shape[i]) // stride + 1 for i in range(4))
    vals = []
    for i0 in range(ker_shape[0]):
        for i1 in range(ker_shape[1]):
            for i2 in range(ker_shape[2]):
                for i3 in range(ker_shape[3]):
                    vals.append(
                        x[:, :,
                          2 * i0:2 * i0 + O[0],
                          2 * i1:2 * i1 + O[1],
                          2 * i2:2 * i2 + O[2],
                          2 * i3:2 * i3 + O[3]])
    return jnp.max(jnp.stack(vals, axis=0), axis=0)


if __name__ == "__main__":
    key = jax.random.PRNGKey(0)
    # Shapes chosen so the PyTorch as_strided view stays in-bounds:
    # k=(2,2,2,2), stride=2, D=6 -> O=3, max read index = 2 + 2*1 = 4 < 6.
    N, C = 2, 4
    D = 6
    ker_shape = (2, 2, 2, 2)
    stride = 2

    x = jax.random.normal(key, (N, C, D, D, D, D), dtype=jnp.float32)

    out = maxpool4d(x, ker_shape, stride)
    out = jax.block_until_ready(out)

    ref = _reference_maxpool4d(x, ker_shape, stride)
    assert out.shape == ref.shape, (out.shape, ref.shape)
    assert jnp.allclose(out, ref), "Pallas MaxPool4d mismatch vs reference"

    print("KERNEL_OK")
</pallas_src>

<mosaic_0001>
module attributes {stable_mosaic.version = 11 : i64} {
  func.func @_maxpool4d_kernel(%arg0: i32, %arg1: memref<6x6x6x6x128xf32, #tpu.memory_space<vmem>>, %arg2: memref<3x3x3x3x128xf32, #tpu.memory_space<vmem>>) attributes {dimension_semantics = [#tpu.dimension_semantics<parallel>], iteration_bounds = array<i64: 1>, scalar_prefetch = 0 : i64, scratch_operands = 0 : i64, tpu.core_type = #tpu.core_type<tc>, window_params = [{transform_indices = @transform_0, window_bounds = array<i64: 6, 6, 6, 6, 128>}, {transform_indices = @transform_1, window_bounds = array<i64: 3, 3, 3, 3, 128>}]} {
    %c0 = arith.constant 0 : index
    %c0_0 = arith.constant 0 : index
    %c0_1 = arith.constant 0 : index
    %c0_2 = arith.constant 0 : index
    %c0_3 = arith.constant 0 : index
    %0 = vector.load %arg1[%c0, %c0_0, %c0_1, %c0_2, %c0_3] : memref<6x6x6x6x128xf32, #tpu.memory_space<vmem>>, vector<3x6x6x6x128xf32>
    %c2 = arith.constant 2 : index
    %c0_4 = arith.constant 0 : index
    %c0_5 = arith.constant 0 : index
    %c0_6 = arith.constant 0 : index
    %c0_7 = arith.constant 0 : index
    %1 = vector.load %arg1[%c2, %c0_4, %c0_5, %c0_6, %c0_7] : memref<6x6x6x6x128xf32, #tpu.memory_space<vmem>>, vector<3x6x6x6x128xf32>
    %2 = arith.maximumf %0, %1 : vector<3x6x6x6x128xf32>
    %3 = vector.extract_strided_slice %2 {offsets = [0, 0, 0, 0, 0], sizes = [3, 3, 6, 6, 128], strides = [1, 1, 1, 1, 1]} : vector<3x6x6x6x128xf32> to vector<3x3x6x6x128xf32>
    %4 = vector.extract_strided_slice %2 {offsets = [0, 2, 0, 0, 0], sizes = [3, 3, 6, 6, 128], strides = [1, 1, 1, 1, 1]} : vector<3x6x6x6x128xf32> to vector<3x3x6x6x128xf32>
    %5 = arith.maximumf %3, %4 : vector<3x3x6x6x128xf32>
    %6 = vector.extract_strided_slice %5 {offsets = [0, 0, 0, 0, 0], sizes = [3, 3, 3, 6, 128], strides = [1, 1, 1, 1, 1]} : vector<3x3x6x6x128xf32> to vector<3x3x3x6x128xf32>
    %7 = vector.extract_strided_slice %5 {offsets = [0, 0, 2, 0, 0], sizes = [3, 3, 3, 6, 128], strides = [1, 1, 1, 1, 1]} : vector<3x3x6x6x128xf32> to vector<3x3x3x6x128xf32>
    %8 = arith.maximumf %6, %7 : vector<3x3x3x6x128xf32>
    %9 = vector.extract_strided_slice %8 {offsets = [0, 0, 0, 0, 0], sizes = [3, 3, 3, 3, 128], strides = [1, 1, 1, 1, 1]} : vector<3x3x3x6x128xf32> to vector<3x3x3x3x128xf32>
    %10 = vector.extract_strided_slice %8 {offsets = [0, 0, 0, 2, 0], sizes = [3, 3, 3, 3, 128], strides = [1, 1, 1, 1, 1]} : vector<3x3x3x6x128xf32> to vector<3x3x3x3x128xf32>
    %11 = arith.maximumf %9, %10 : vector<3x3x3x3x128xf32>
    %c0_8 = arith.constant 0 : index
    %c0_9 = arith.constant 0 : index
    %c0_10 = arith.constant 0 : index
    %c0_11 = arith.constant 0 : index
    %c0_12 = arith.constant 0 : index
    %12 = vector.load %arg2[%c0_8, %c0_9, %c0_10, %c0_11, %c0_12] : memref<3x3x3x3x128xf32, #tpu.memory_space<vmem>>, vector<3x3x3x3x128xf32>
    tpu.vector_store %arg2[%c0_8, %c0_9, %c0_10, %c0_11, %c0_12], %11 {strides = array<i32>} : memref<3x3x3x3x128xf32, #tpu.memory_space<vmem>>, vector<3x3x3x3x128xf32>,
    return
  }
  func.func @transform_0(%arg0: i32) -> (i32, i32, i32, i32, i32) {
    %c0_i32 = arith.constant 0 : i32
    %c0_i32_0 = arith.constant 0 : i32
    %c0_i32_1 = arith.constant 0 : i32
    %c0_i32_2 = arith.constant 0 : i32
    %c0_i32_3 = arith.constant 0 : i32
    return %c0_i32, %c0_i32_0, %c0_i32_1, %c0_i32_2, %arg0 : i32, i32, i32, i32, i32
  }
  func.func @transform_1(%arg0: i32) -> (i32, i32, i32, i32, i32) {
    %c0_i32 = arith.constant 0 : i32
    %c0_i32_0 = arith.constant 0 : i32
    %c0_i32_1 = arith.constant 0 : i32
    %c0_i32_2 = arith.constant 0 : i32
    %c0_i32_3 = arith.constant 0 : i32
    return %c0_i32, %c0_i32_0, %c0_i32_1, %c0_i32_2, %arg0 : i32, i32, i32, i32, i32
  }
}

</mosaic_0001>

<llo_original>
// kernel: tpu_custom_call.1
$region0: #{tpu_custom_call.1}
  #allocation0 [shape = 'u32[]', space=smem, size = 0x4, offset = 0x4, fixed_abs, tag = 'smem constant byte address 0x4 - core index']
  #allocation1 [shape = 'u32[144,128]{1,0:T(1,128)}', space=vmem, size = 0x12000, scoped, tag = 'internal scratch']
  %s0 = inlined_call_operand.hbm [shape: f32[6,6,6,6,128], index: 0, kind: input, shape index: {}]
  %s1 = inlined_call_operand.hbm [shape: f32[3,3,3,3,128], index: 1, kind: output, shape index: {}]
  %s2 = sld [smem:[#allocation0]]
  $region18: #{tpu_custom_call.1} parent=0
    _
  %s4 = ssub.s32 1, %s2
  %s5 = scalar_select 0, %s4, %s2
  $region1: #{tpu_custom_call.1} parent=0
    #allocation2 [shape = 'u8[884736]{0}', space=vmem, size = 0xd8000, scoped, tag = 'input window, operand 0, single buffered']
    #allocation3 [shape = 's32[1]{0}', space=sflag, size = 0x4, scoped, tag = 'scoped memory for tpu_custom_call.1']
    #allocation4 [shape = 's32[1]{0}', space=sflag, size = 0x4, scoped, tag = 'scoped memory for tpu_custom_call.1']
    #allocation5 [shape = 'u8[55296]{0}', space=vmem, size = 0xd800, scoped, tag = 'output window, operand 0, single buffered']
    %6 = vsyncpa [#allocation3], 0
    %7 = vsyncpa [#allocation4], 0
    // Predicated region
    $region2: #{tpu_custom_call.1} parent=1 // pred_check
      _
    $region3: #{tpu_custom_call.1} parent=1 // pred_check_branch
      %9 = sbr.rel (0) target = $region5
    $region4: #{tpu_custom_call.1} parent=1 // pred_region
      %s11 = ssub.s32 27648, 27648
      %12 = vsyncadd [#allocation3], %s11
      %s13 = sshll.u32 [#allocation2], 4
      %s14 = int_to_ptr.vmem [resolvable:$true] %s13
      %19 = dma.hbm_to_vmem [thread:$0]  %s0, 27648, %s14, [#allocation3], 128, 128, 8
    $region5: #{tpu_custom_call.1} parent=1 // pred_fallthru
      _
    // Predicated region
    $region6: #{tpu_custom_call.1} parent=1 // pred_check
      _
    $region7: #{tpu_custom_call.1} parent=1 // pred_check_branch
      %21 = sbr.rel (0) target = $region9
    $region8: #{tpu_custom_call.1} parent=1 // pred_region
      %22 = dma.done [#allocation3], 27648
    $region9: #{tpu_custom_call.1} parent=1 // pred_fallthru
      _
    %v23 = vld [vmem:[#allocation2] sm:$0x3f]
    %v24 = vld [vmem:[#allocation2 + $0x8] sm:$0x3f]
    %v25 = vld [vmem:[#allocation2 + $0x10] sm:$0x3f]
    %v26 = vld [vmem:[#allocation2 + $0x18] sm:$0x3f]
    %v27 = vld [vmem:[#allocation2 + $0x20] sm:$0x3f]
    %v28 = vld [vmem:[#allocation2 + $0x30] sm:$0x3f]
    %v29 = vld [vmem:[#allocation2 + $0x38] sm:$0x3f]
    %v30 = vld [vmem:[#allocation2 + $0x40] sm:$0x3f]
    %v31 = vld [vmem:[#allocation2 + $0x48] sm:$0x3f]
    %v32 = vld [vmem:[#allocation2 + $0x50] sm:$0x3f]
    %v33 = vld [vmem:[#allocation2 + $0x60] sm:$0x3f]
    %v34 = vld [vmem:[#allocation2 + $0x68] sm:$0x3f]
    %v35 = vld [vmem:[#allocation2 + $0x70] sm:$0x3f]
    %v36 = vld [vmem:[#allocation2 + $0x78] sm:$0x3f]
    %v37 = vld [vmem:[#allocation2 + $0x80] sm:$0x3f]
    %v38 = vld [vmem:[#allocation2 + $0x90] sm:$0x3f]
    %v39 = vld [vmem:[#allocation2 + $0x98] sm:$0x3f]
    %v40 = vld [vmem:[#allocation2 + $0xa0] sm:$0x3f]
    %v41 = vld [vmem:[#allocation2 + $0xa8] sm:$0x3f]
    %v42 = vld [vmem:[#allocation2 + $0xb0] sm:$0x3f]
    %v43 = vld [vmem:[#allocation2 + $0xc0] sm:$0x3f]
    %v44 = vld [vmem:[#allocation2 + $0xc8] sm:$0x3f]
    %v45 = vld [vmem:[#allocation2 + $0xd0] sm:$0x3f]
    %v46 = vld [vmem:[#allocation2 + $0xd8] sm:$0x3f]
    %v47 = vld [vmem:[#allocation2 + $0xe0] sm:$0x3f]
    %v48 = vld [vmem:[#allocation2 + $0x120] sm:$0x3f]
    %v49 = vld [vmem:[#allocation2 + $0x128] sm:$0x3f]
    %v50 = vld [vmem:[#allocation2 + $0x130] sm:$0x3f]
    %v51 = vld [vmem:[#allocation2 + $0x138] sm:$0x3f]
    %v52 = vld [vmem:[#allocation2 + $0x140] sm:$0x3f]
    %v53 = vld [vmem:[#allocation2 + $0x150] sm:$0x3f]
    %v54 = vld [vmem:[#allocation2 + $0x158] sm:$0x3f]
    %v55 = vld [vmem:[#allocation2 + $0x160] sm:$0x3f]
    %v56 = vld [vmem:[#allocation2 + $0x168] sm:$0x3f]
    %v57 = vld [vmem:[#allocation2 + $0x170] sm:$0x3f]
    %v58 = vld [vmem:[#allocation2 + $0x180] sm:$0x3f]
    %v59 = vld [vmem:[#allocation2 + $0x188] sm:$0x3f]
    %v60 = vld [vmem:[#allocation2 + $0x190] sm:$0x3f]
    %v61 = vld [vmem:[#allocation2 + $0x198] sm:$0x3f]
    %v62 = vld [vmem:[#allocation2 + $0x1a0] sm:$0x3f]
    %v63 = vld [vmem:[#allocation2 + $0x1b0] sm:$0x3f]
    %v64 = vld [vmem:[#allocation2 + $0x1b8] sm:$0x3f]
    %v65 = vld [vmem:[#allocation2 + $0x1c0] sm:$0x3f]
    %v66 = vld [vmem:[#allocation2 + $0x1c8] sm:$0x3f]
    %v67 = vld [vmem:[#allocation2 + $0x1d0] sm:$0x3f]
    %v68 = vld [vmem:[#allocation2 + $0x1e0] sm:$0x3f]
    %v69 = vld [vmem:[#allocation2 + $0x1e8] sm:$0x3f]
    %v70 = vld [vmem:[#allocation2 + $0x1f0] sm:$0x3f]
    %v71 = vld [vmem:[#allocation2 + $0x1f8] sm:$0x3f]
    %v72 = vld [vmem:[#allocation2 + $0x200] sm:$0x3f]
    %v73 = vld [vmem:[#allocation2 + $0x240] sm:$0x3f]
    %v74 = vld [vmem:[#allocation2 + $0x248] sm:$0x3f]
    %v75 = vld [vmem:[#allocation2 + $0x250] sm:$0x3f]
    %v76 = vld [vmem:[#allocation2 + $0x258] sm:$0x3f]
    %v77 = vld [vmem:[#allocation2 + $0x260] sm:$0x3f]
    %v78 = vld [vmem:[#allocation2 + $0x270] sm:$0x3f]
    %v79 = vld [vmem:[#allocation2 + $0x278] sm:$0x3f]
    %v80 = vld [vmem:[#allocation2 + $0x280] sm:$0x3f]
    %v81 = vld [vmem:[#allocation2 + $0x288] sm:$0x3f]
    %v82 = vld [vmem:[#allocation2 + $0x290] sm:$0x3f]
    %v83 = vld [vmem:[#allocation2 + $0x2a0] sm:$0x3f]
    %v84 = vld [vmem:[#allocation2 + $0x2a8] sm:$0x3f]
    %v85 = vld [vmem:[#allocation2 + $0x2b0] sm:$0x3f]
    %v86 = vld [vmem:[#allocation2 + $0x2b8] sm:$0x3f]
    %v87 = vld [vmem:[#allocation2 + $0x2c0] sm:$0x3f]
    %v88 = vld [vmem:[#allocation2 + $0x2d0] sm:$0x3f]
    %v89 = vld [vmem:[#allocation2 + $0x2d8] sm:$0x3f]
    %v90 = vld [vmem:[#allocation2 + $0x2e0] sm:$0x3f]
    %v91 = vld [vmem:[#allocation2 + $0x2e8] sm:$0x3f]
    %v92 = vld [vmem:[#allocation2 + $0x2f0] sm:$0x3f]
    %v93 = vld [vmem:[#allocation2 + $0x300] sm:$0x3f]
    %v94 = vld [vmem:[#allocation2 + $0x308] sm:$0x3f]
    %v95 = vld [vmem:[#allocation2 + $0x310] sm:$0x3f]
    %v96 = vld [vmem:[#allocation2 + $0x318] sm:$0x3f]
    %v97 = vld [vmem:[#allocation2 + $0x320] sm:$0x3f]
    %s98 = scalar_lea.vmem [#allocation2], 576
    %v99 = vld [vmem:[%s98] sm:$0x3f]
    %v100 = vld [vmem:[%s98 + $0x8] sm:$0x3f]
    %v101 = vld [vmem:[%s98 + $0x10] sm:$0x3f]
    %v102 = vld [vmem:[%s98 + $0x18] sm:$0x3f]
    %v103 = vld [vmem:[%s98 + $0x20] sm:$0x3f]
    %v104 = vld [vmem:[%s98 + $0x30] sm:$0x3f]
    %v105 = vld [vmem:[%s98 + $0x38] sm:$0x3f]
    %v106 = vld [vmem:[%s98 + $0x40] sm:$0x3f]
    %v107 = vld [vmem:[%s98 + $0x48] sm:$0x3f]
    %v108 = vld [vmem:[%s98 + $0x50] sm:$0x3f]
    %v109 = vld [vmem:[%s98 + $0x60] sm:$0x3f]
    %v110 = vld [vmem:[%s98 + $0x68] sm:$0x3f]
    %v111 = vld [vmem:[%s98 + $0x70] sm:$0x3f]
    %v112 = vld [vmem:[%s98 + $0x78] sm:$0x3f]
    %v113 = vld [vmem:[%s98 + $0x80] sm:$0x3f]
    %v114 = vld [vmem:[%s98 + $0x90] sm:$0x3f]
    %v115 = vld [vmem:[%s98 + $0x98] sm:$0x3f]
    %v116 = vld [vmem:[%s98 + $0xa0] sm:$0x3f]
    %v117 = vld [vmem:[%s98 + $0xa8] sm:$0x3f]
    %v118 = vld [vmem:[%s98 + $0xb0] sm:$0x3f]
    %v119 = vld [vmem:[%s98 + $0xc0] sm:$0x3f]
    %v120 = vld [vmem:[%s98 + $0xc8] sm:$0x3f]
    %v121 = vld [vmem:[%s98 + $0xd0] sm:$0x3f]
    %v122 = vld [vmem:[%s98 + $0xd8] sm:$0x3f]
    %v123 = vld [vmem:[%s98 + $0xe0] sm:$0x3f]
    %v124 = vld [vmem:[%s98 + $0x120] sm:$0x3f]
    %v125 = vld [vmem:[%s98 + $0x128] sm:$0x3f]
    %v126 = vld [vmem:[%s98 + $0x130] sm:$0x3f]
    %v127 = vld [vmem:[%s98 + $0x138] sm:$0x3f]
    %v128 = vld [vmem:[%s98 + $0x140] sm:$0x3f]
    %v129 = vld [vmem:[%s98 + $0x150] sm:$0x3f]
    %v130 = vld [vmem:[%s98 + $0x158] sm:$0x3f]
    %v131 = vld [vmem:[%s98 + $0x160] sm:$0x3f]
    %v132 = vld [vmem:[%s98 + $0x168] sm:$0x3f]
    %v133 = vld [vmem:[%s98 + $0x170] sm:$0x3f]
    %v134 = vld [vmem:[%s98 + $0x180] sm:$0x3f]
    %v135 = vld [vmem:[%s98 + $0x188] sm:$0x3f]
    %v136 = vld [vmem:[%s98 + $0x190] sm:$0x3f]
    %v137 = vld [vmem:[%s98 + $0x198] sm:$0x3f]
    %v138 = vld [vmem:[%s98 + $0x1a0] sm:$0x3f]
    %v139 = vld [vmem:[%s98 + $0x1b0] sm:$0x3f]
    %v140 = vld [vmem:[%s98 + $0x1b8] sm:$0x3f]
    %v141 = vld [vmem:[%s98 + $0x1c0] sm:$0x3f]
    %v142 = vld [vmem:[%s98 + $0x1c8] sm:$0x3f]
    %v143 = vld [vmem:[%s98 + $0x1d0] sm:$0x3f]
    %v144 = vld [vmem:[%s98 + $0x1e0] sm:$0x3f]
    %v145 = vld [vmem:[%s98 + $0x1e8] sm:$0x3f]
    %v146 = vld [vmem:[%s98 + $0x1f0] sm:$0x3f]
    %v147 = vld [vmem:[%s98 + $0x1f8] sm:$0x3f]
    %v148 = vld [vmem:[%s98 + $0x200] sm:$0x3f]
    %v149 = vld [vmem:[%s98 + $0x240] sm:$0x3f]
    %v150 = vld [vmem:[%s98 + $0x248] sm:$0x3f]
    %v151 = vld [vmem:[%s98 + $0x250] sm:$0x3f]
    %v152 = vld [vmem:[%s98 + $0x258] sm:$0x3f]
    %v153 = vld [vmem:[%s98 + $0x260] sm:$0x3f]
    %v154 = vld [vmem:[%s98 + $0x270] sm:$0x3f]
    %v155 = vld [vmem:[%s98 + $0x278] sm:$0x3f]
    %v156 = vld [vmem:[%s98 + $0x280] sm:$0x3f]
    %v157 = vld [vmem:[%s98 + $0x288] sm:$0x3f]
    %v158 = vld [vmem:[%s98 + $0x290] sm:$0x3f]
    %v159 = vld [vmem:[%s98 + $0x2a0] sm:$0x3f]
    %v160 = vld [vmem:[%s98 + $0x2a8] sm:$0x3f]
    %v161 = vld [vmem:[%s98 + $0x2b0] sm:$0x3f]
    %v162 = vld [vmem:[%s98 + $0x2b8] sm:$0x3f]
    %v163 = vld [vmem:[%s98 + $0x2c0] sm:$0x3f]
    %v164 = vld [vmem:[%s98 + $0x2d0] sm:$0x3f]
    %v165 = vld [vmem:[%s98 + $0x2d8] sm:$0x3f]
    %v166 = vld [vmem:[%s98 + $0x2e0] sm:$0x3f]
    %v167 = vld [vmem:[%s98 + $0x2e8] sm:$0x3f]
    %v168 = vld [vmem:[%s98 + $0x2f0] sm:$0x3f]
    %v169 = vld [vmem:[%s98 + $0x300] sm:$0x3f]
    %v170 = vld [vmem:[%s98 + $0x308] sm:$0x3f]
    %v171 = vld [vmem:[%s98 + $0x310] sm:$0x3f]
    %v172 = vld [vmem:[%s98 + $0x318] sm:$0x3f]
    %v173 = vld [vmem:[%s98 + $0x320] sm:$0x3f]
    %v174 = vmax.f32 %v23, %v99
    %v175 = vmax.f32 %v24, %v100
    %v176 = vmax.f32 %v25, %v101
    %v177 = vmax.f32 %v26, %v102
    %v178 = vmax.f32 %v27, %v103
    %v179 = vmax.f32 %v28, %v104
    %v180 = vmax.f32 %v29, %v105
    %v181 = vmax.f32 %v30, %v106
    %v182 = vmax.f32 %v31, %v107
    %v183 = vmax.f32 %v32, %v108
    %v184 = vmax.f32 %v33, %v109
    %v185 = vmax.f32 %v34, %v110
    %v186 = vmax.f32 %v35, %v111
    %v187 = vmax.f32 %v36, %v112
    %v188 = vmax.f32 %v37, %v113
    %v189 = vmax.f32 %v38, %v114
    %v190 = vmax.f32 %v39, %v115
    %v191 = vmax.f32 %v40, %v116
    %v192 = vmax.f32 %v41, %v117
    %v193 = vmax.f32 %v42, %v118
    %v194 = vmax.f32 %v43, %v119
    %v195 = vmax.f32 %v44, %v120
    %v196 = vmax.f32 %v45, %v121
    %v197 = vmax.f32 %v46, %v122
    %v198 = vmax.f32 %v47, %v123
    %v199 = vmax.f32 %v48, %v124
    %v200 = vmax.f32 %v49, %v125
    %v201 = vmax.f32 %v50, %v126
    %v202 = vmax.f32 %v51, %v127
    %v203 = vmax.f32 %v52, %v128
    %v204 = vmax.f32 %v53, %v129
    %v205 = vmax.f32 %v54, %v130
    %v206 = vmax.f32 %v55, %v131
    %v207 = vmax.f32 %v56, %v132
    %v208 = vmax.f32 %v57, %v133
    %v209 = vmax.f32 %v58, %v134
    %v210 = vmax.f32 %v59, %v135
    %v211 = vmax.f32 %v60, %v136
    %v212 = vmax.f32 %v61, %v137
    %v213 = vmax.f32 %v62, %v138
    %v214 = vmax.f32 %v63, %v139
    %v215 = vmax.f32 %v64, %v140
    %v216 = vmax.f32 %v65, %v141
    %v217 = vmax.f32 %v66, %v142
    %v218 = vmax.f32 %v67, %v143
    %v219 = vmax.f32 %v68, %v144
    %v220 = vmax.f32 %v69, %v145
    %v221 = vmax.f32 %v70, %v146
    %v222 = vmax.f32 %v71, %v147
    %v223 = vmax.f32 %v72, %v148
    %v224 = vmax.f32 %v73, %v149
    %v225 = vmax.f32 %v74, %v150
    %v226 = vmax.f32 %v75, %v151
    %v227 = vmax.f32 %v76, %v152
    %v228 = vmax.f32 %v77, %v153
    %v229 = vmax.f32 %v78, %v154
    %v230 = vmax.f32 %v79, %v155
    %v231 = vmax.f32 %v80, %v156
    %v232 = vmax.f32 %v81, %v157
    %v233 = vmax.f32 %v82, %v158
    %v234 = vmax.f32 %v83, %v159
    %v235 = vmax.f32 %v84, %v160
    %v236 = vmax.f32 %v85, %v161
    %v237 = vmax.f32 %v86, %v162
    %v238 = vmax.f32 %v87, %v163
    %v239 = vmax.f32 %v88, %v164
    %v240 = vmax.f32 %v89, %v165
    %v241 = vmax.f32 %v90, %v166
    %v242 = vmax.f32 %v91, %v167
    %v243 = vmax.f32 %v92, %v168
    %v244 = vmax.f32 %v93, %v169
    %v245 = vmax.f32 %v94, %v170
    %v246 = vmax.f32 %v95, %v171
    %v247 = vmax.f32 %v96, %v172
    %v248 = vmax.f32 %v97, %v173
    %v249 = vmax.f32 %v174, %v184
    %v250 = vmax.f32 %v175, %v185
    %v251 = vmax.f32 %v176, %v186
    %v252 = vmax.f32 %v177, %v187
    %v253 = vmax.f32 %v178, %v188
    %v254 = vmax.f32 %v179, %v189
    %v255 = vmax.f32 %v180, %v190
    %v256 = vmax.f32 %v181, %v191
    %v257 = vmax.f32 %v182, %v192
    %v258 = vmax.f32 %v183, %v193
    %v259 = vmax.f32 %v184, %v194
    %v260 = vmax.f32 %v185, %v195
    %v261 = vmax.f32 %v186, %v196
    %v262 = vmax.f32 %v187, %v197
    %v263 = vmax.f32 %v188, %v198
    %v264 = vmax.f32 %v199, %v209
    %v265 = vmax.f32 %v200, %v210
    %v266 = vmax.f32 %v201, %v211
    %v267 = vmax.f32 %v202, %v212
    %v268 = vmax.f32 %v203, %v213
    %v269 = vmax.f32 %v204, %v214
    %v270 = vmax.f32 %v205, %v215
    %v271 = vmax.f32 %v206, %v216
    %v272 = vmax.f32 %v207, %v217
    %v273 = vmax.f32 %v208, %v218
    %v274 = vmax.f32 %v209, %v219
    %v275 = vmax.f32 %v210, %v220
    %v276 = vmax.f32 %v211, %v221
    %v277 = vmax.f32 %v212, %v222
    %v278 = vmax.f32 %v213, %v223
    %v279 = vmax.f32 %v224, %v234
    %v280 = vmax.f32 %v225, %v235
    %v281 = vmax.f32 %v226, %v236
    %v282 = vmax.f32 %v227, %v237
    %v283 = vmax.f32 %v228, %v238
    %v284 = vmax.f32 %v229, %v239
    %v285 = vmax.f32 %v230, %v240
    %v286 = vmax.f32 %v231, %v241
    %v287 = vmax.f32 %v232, %v242
    %v288 = vmax.f32 %v233, %v243
    %v289 = vmax.f32 %v234, %v244
    %v290 = vmax.f32 %v235, %v245
    %v291 = vmax.f32 %v236, %v246
    %v292 = vmax.f32 %v237, %v247
    %v293 = vmax.f32 %v238, %v248
    %v294 = vmax.f32 %v249, %v251
    %v295 = vmax.f32 %v250, %v252
    %v296 = vmax.f32 %v251, %v253
    %v297 = vmax.f32 %v254, %v256
    %v298 = vmax.f32 %v255, %v257
    %v299 = vmax.f32 %v256, %v258
    %v300 = vmax.f32 %v259, %v261
    %v301 = vmax.f32 %v260, %v262
    %v302 = vmax.f32 %v261, %v263
    %v303 = vmax.f32 %v264, %v266
    %v304 = vmax.f32 %v265, %v267
    %v305 = vmax.f32 %v266, %v268
    %v306 = vmax.f32 %v269, %v271
    %v307 = vmax.f32 %v270, %v272
    %v308 = vmax.f32 %v271, %v273
    %v309 = vmax.f32 %v274, %v276
    %v310 = vmax.f32 %v275, %v277
    %v311 = vmax.f32 %v276, %v278
    %v312 = vmax.f32 %v279, %v281
    %v313 = vmax.f32 %v280, %v282
    %v314 = vmax.f32 %v281, %v283
    %v315 = vmax.f32 %v284, %v286
    %v316 = vmax.f32 %v285, %v287
    %v317 = vmax.f32 %v286, %v288
    %v318 = vmax.f32 %v289, %v291
    %v319 = vmax.f32 %v290, %v292
    %v320 = vmax.f32 %v291, %v293
    %v348 = vrot.slane %v294, 2
    %v349 = vrot.slane %v295, 2
    %v350 = vrot.slane %v296, 2
    %v351 = vrot.slane %v297, 2
    %v352 = vrot.slane %v298, 2
    %v353 = vrot.slane %v299, 2
    %v354 = vrot.slane %v300, 2
    %v355 = vrot.slane %v301, 2
    %v356 = vrot.slane %v302, 2
    %v357 = vrot.slane %v303, 2
    %v358 = vrot.slane %v304, 2
    %v359 = vrot.slane %v305, 2
    %v360 = vrot.slane %v306, 2
    %v361 = vrot.slane %v307, 2
    %v362 = vrot.slane %v308, 2
    %v363 = vrot.slane %v309, 2
    %v364 = vrot.slane %v310, 2
    %v365 = vrot.slane %v311, 2
    %v366 = vrot.slane %v312, 2
    %v367 = vrot.slane %v313, 2
    %v368 = vrot.slane %v314, 2
    %v369 = vrot.slane %v315, 2
    %v370 = vrot.slane %v316, 2
    %v371 = vrot.slane %v317, 2
    %v372 = vrot.slane %v318, 2
    %v373 = vrot.slane %v319, 2
    %v374 = vrot.slane %v320, 2
    %v402 = vmax.f32 %v294, %v348
    %v403 = vmax.f32 %v295, %v349
    %v404 = vmax.f32 %v296, %v350
    %v405 = vmax.f32 %v297, %v351
    %v406 = vmax.f32 %v298, %v352
    %v407 = vmax.f32 %v299, %v353
    %v408 = vmax.f32 %v300, %v354
    %v409 = vmax.f32 %v301, %v355
    %v410 = vmax.f32 %v302, %v356
    %v411 = vmax.f32 %v303, %v357
    %v412 = vmax.f32 %v304, %v358
    %v413 = vmax.f32 %v305, %v359
    %v414 = vmax.f32 %v306, %v360
    %v415 = vmax.f32 %v307, %v361
    %v416 = vmax.f32 %v308, %v362
    %v417 = vmax.f32 %v309, %v363
    %v418 = vmax.f32 %v310, %v364
    %v419 = vmax.f32 %v311, %v365
    %v420 = vmax.f32 %v312, %v366
    %v421 = vmax.f32 %v313, %v367
    %v422 = vmax.f32 %v314, %v368
    %v423 = vmax.f32 %v315, %v369
    %v424 = vmax.f32 %v316, %v370
    %v425 = vmax.f32 %v317, %v371
    %v426 = vmax.f32 %v318, %v372
    %v427 = vmax.f32 %v319, %v373
    %v428 = vmax.f32 %v320, %v374
    %429 = vst [vmem:[#allocation5] sm:$0x7] %v402
    %430 = vst [vmem:[#allocation5 + $0x4] sm:$0x7] %v403
    %431 = vst [vmem:[#allocation5 + $0x8] sm:$0x7] %v404
    %432 = vst [vmem:[#allocation5 + $0xc] sm:$0x7] %v405
    %433 = vst [vmem:[#allocation5 + $0x10] sm:$0x7] %v406
    %434 = vst [vmem:[#allocation5 + $0x14] sm:$0x7] %v407
    %435 = vst [vmem:[#allocation5 + $0x18] sm:$0x7] %v408
    %436 = vst [vmem:[#allocation5 + $0x1c] sm:$0x7] %v409
    %437 = vst [vmem:[#allocation5 + $0x20] sm:$0x7] %v410
    %438 = vst [vmem:[#allocation5 + $0x24] sm:$0x7] %v411
    %439 = vst [vmem:[#allocation5 + $0x28] sm:$0x7] %v412
    %440 = vst [vmem:[#allocation5 + $0x2c] sm:$0x7] %v413
    %441 = vst [vmem:[#allocation5 + $0x30] sm:$0x7] %v414
    %442 = vst [vmem:[#allocation5 + $0x34] sm:$0x7] %v415
    %443 = vst [vmem:[#allocation5 + $0x38] sm:$0x7] %v416
    %444 = vst [vmem:[#allocation5 + $0x3c] sm:$0x7] %v417
    %445 = vst [vmem:[#allocation5 + $0x40] sm:$0x7] %v418
    %446 = vst [vmem:[#allocation5 + $0x44] sm:$0x7] %v419
    %447 = vst [vmem:[#allocation5 + $0x48] sm:$0x7] %v420
    %448 = vst [vmem:[#allocation5 + $0x4c] sm:$0x7] %v421
    %449 = vst [vmem:[#allocation5 + $0x50] sm:$0x7] %v422
    %450 = vst [vmem:[#allocation5 + $0x54] sm:$0x7] %v423
    %451 = vst [vmem:[#allocation5 + $0x58] sm:$0x7] %v424
    %452 = vst [vmem:[#allocation5 + $0x5c] sm:$0x7] %v425
    %453 = vst [vmem:[#allocation5 + $0x60] sm:$0x7] %v426
    %454 = vst [vmem:[#allocation5 + $0x64] sm:$0x7] %v427
    %455 = vst [vmem:[#allocation5 + $0x68] sm:$0x7] %v428
    // Predicated region
    $region10: #{tpu_custom_call.1} parent=1 // pred_check
      _
    $region11: #{tpu_custom_call.1} parent=1 // pred_check_branch
      %457 = sbr.rel (0) target = $region13
    $region12: #{tpu_custom_call.1} parent=1 // pred_region
      %s459 = ssub.s32 1728, 1728
      %460 = vsyncadd [#allocation4], %s459
      %s461 = sshll.u32 [#allocation5], 4
      %s462 = int_to_ptr.vmem [resolvable:$true] %s461
      %467 = dma.vmem_to_hbm [thread:$0]  %s462, 1728, %s1, [#allocation4], 64, 64, 4
    $region13: #{tpu_custom_call.1} parent=1 // pred_fallthru
      _
    // Predicated region
    $region14: #{tpu_custom_call.1} parent=1 // pred_check
      _
    $region15: #{tpu_custom_call.1} parent=1 // pred_check_branch
      %469 = sbr.rel (0) target = $region17
    $region16: #{tpu_custom_call.1} parent=1 // pred_region
      %470 = dma.done [#allocation4], 1728
    $region17: #{tpu_custom_call.1} parent=1 // pred_fallthru
      _
    %471 = vsyncpa [#allocation3], 1
    %472 = vsyncpa [#allocation4], 1

</llo_original>
